<compile_context>
chip_gen: v5e
topology: v5e:2x2
jax: 0.10.0
libtpu: 0.0.40
codegen_flags: <defaults>
</compile_context>

<pallas_src>
import functools

import jax
import jax.numpy as jnp
from jax.experimental import pallas as pl
from jax.experimental.pallas import tpu as pltpu


def _gelu_tanh(x):
    # GELU with tanh approximation (matches nn.GELU(approximate='tanh')).
    # Runs in f32; tanh goes to the EUP, the polynomial to the VPU -- free under MXU cadence.
    c = 0.7978845608028654  # sqrt(2/pi)
    return 0.5 * x * (1.0 + jnp.tanh(c * (x + 0.044715 * (x * x * x))))


def _mlp_kernel(x_ref, w1_ref, b1_ref, w2_ref, b2_ref, o_ref, acc_ref):
    # x_ref: (tm, tk)   w1_ref: (tk, H)   b1_ref: (1, H) f32
    # w2_ref: (H, H)    b2_ref: (1, H) f32
    # o_ref: (tm, H)    acc_ref: (tm, H) f32 scratch (fc1 accumulator over K tiles)
    k = pl.program_id(1)

    @pl.when(k == 0)
    def _():
        acc_ref[...] = jnp.zeros_like(acc_ref)

    # fc1 partial product: native-dtype (bf16) operands into the MXU, f32 accumulation.
    acc_ref[...] += jnp.dot(x_ref[...], w1_ref[...], preferred_element_type=jnp.float32)

    @pl.when(k == pl.num_programs(1) - 1)
    def _():
        h = acc_ref[...] + b1_ref[...]          # bias stays f32
        h = _gelu_tanh(h)                       # fused tanh-GELU in f32
        h = h.astype(w2_ref.dtype)              # back to weight dtype for bf16-rate MXU
        o = jnp.dot(h, w2_ref[...], preferred_element_type=jnp.float32)
        o = o + b2_ref[...]
        o_ref[...] = o.astype(o_ref.dtype)


def _round_up(x, m):
    return ((x + m - 1) // m) * m


def _resident_spec(block_shape, index_map):
    """Constant-index operand: fetched once; single-buffer it when supported."""
    try:
        return pl.BlockSpec(block_shape, index_map, pipeline_mode=pl.Buffered(1))
    except (AttributeError, TypeError):
        # Older JAX without pipeline_mode / Buffered: fall back to default (2 buffers).
        return pl.BlockSpec(block_shape, index_map)


def _pick_tk(cin):
    """K-tile for fc1 so W1 streaming overlaps compute; full Cin when it is small/awkward."""
    if cin <= 1024:
        return cin
    for cand in (1024, 512, 256, 128):
        if cin % cand == 0:
            return cand
    return cin  # TODO(synk): ragged K tiles (non-multiple-of-128 Cin) kept un-split for safety.


@functools.partial(jax.jit, static_argnames=("tm",))
def caption_embedder_forward(caption, w1, b1, w2, b2, *, tm=256):
    """caption: [B, T, Cin] -> [B, T, H] via fc2(gelu_tanh(fc1(caption)))."""
    B, T, Cin = caption.shape
    H = w1.shape[1]
    M = B * T
    x = caption.reshape(M, Cin)  # metadata-only reshape, no HBM copy

    itemsize = jnp.dtype(caption.dtype).itemsize
    wbytes = jnp.dtype(w1.dtype).itemsize

    # Row tile: multiple of the sublane pack (8 rows f32, 16 rows bf16) so loads/stores
    # avoid packed-pair masking; clamp to (padded) M.
    pack = max(8, 32 // itemsize)
    m_pad = _round_up(M, pack)
    tm = max(pack, min(_round_up(tm, pack), m_pad))
    n_m = pl.cdiv(M, tm)
    # v7x: the "parallel" row axis shards across 2 TensorCores -> prefer >=2, even steps.
    if n_m == 1 and m_pad >= 2 * pack:
        tm = _round_up(pl.cdiv(m_pad, 2), pack)
        n_m = pl.cdiv(M, tm)
    elif 1 < n_m <= 8 and n_m % 2 == 1:
        tm_even = _round_up(pl.cdiv(m_pad, n_m + 1), pack)
        if tm_even >= pack:
            tm = tm_even
            n_m = pl.cdiv(M, tm)

    tk = _pick_tk(Cin)
    n_k = pl.cdiv(Cin, tk)
    grid = (n_m, n_k)  # K (reduction) axis last; ragged M tail handled by Pallas masking.

    # VMEM budget: streamed operands double-buffered, resident ones single-buffered,
    # plus the f32 accumulator scratch.  Per-generation cap with ~25% headroom.
    need = (
        2 * tm * tk * itemsize      # x tiles (double-buffered)
        + 2 * tk * H * wbytes       # W1 tiles (streamed, double-buffered)
        + 1 * H * H * wbytes        # W2 resident (Buffered(1))
        + 2 * H * 4                 # b1/b2 in f32 (Buffered(1))
        + 2 * tm * H * itemsize     # output tiles (double-buffered)
        + tm * H * 4                # f32 accumulator scratch
    )
    try:
        vmem_cap = int(pltpu.get_tpu_info().vmem_capacity_bytes)
    except Exception:
        vmem_cap = 64 * 1024 * 1024  # safe lower bound (v7x per-TC VMEM)
    cap = (vmem_cap * 3) // 4        # ~48 MiB on v7x, ~96 MiB on v5e/v6e
    vmem_limit = int(min(max(need * 5 // 4, 32 * 1024 * 1024), cap))

    cost = pl.CostEstimate(
        flops=2 * M * H * (Cin + H),
        transcendentals=M * H,  # one tanh per hidden activation
        bytes_accessed=(M * Cin * itemsize + Cin * H * wbytes + H * H * wbytes
                        + 2 * H * 4 + M * H * itemsize),
    )

    out = pl.pallas_call(
        _mlp_kernel,
        out_shape=jax.ShapeDtypeStruct((M, H), caption.dtype),
        grid_spec=pltpu.PrefetchScalarGridSpec(
            num_scalar_prefetch=0,
            grid=grid,
            in_specs=[
                pl.BlockSpec((tm, tk), lambda i, k: (i, k)),   # x tile streams over rows & K
                pl.BlockSpec((tk, H), lambda i, k: (k, 0)),    # W1 streams over K (overlaps MXU)
                _resident_spec((1, H), lambda i, k: (0, 0)),   # b1 resident, f32, single-buffered
                _resident_spec((H, H), lambda i, k: (0, 0)),   # W2 resident, single-buffered
                _resident_spec((1, H), lambda i, k: (0, 0)),   # b2 resident, f32, single-buffered
            ],
            out_specs=pl.BlockSpec((tm, H), lambda i, k: (i, 0)),  # lane-dense output slab
            scratch_shapes=[pltpu.VMEM((tm, H), jnp.float32)],     # fc1 f32 accumulator
        ),
        compiler_params=pltpu.CompilerParams(
            dimension_semantics=("parallel", "arbitrary"),  # rows shard across v7x's 2 TCs
            vmem_limit_bytes=vmem_limit,
        ),
        cost_estimate=cost,
    )(x, w1, b1, w2, b2)

    return out.reshape(B, T, H)


def init_caption_embedder_params(key, in_channels, hidden_size, dtype=jnp.bfloat16):
    k1, k2, k3, k4 = jax.random.split(key, 4)
    # Weights stored transposed vs. PyTorch nn.Linear ([out, in]); biases kept in f32.
    w1 = (jax.random.normal(k1, (in_channels, hidden_size), jnp.float32) * 0.02).astype(dtype)
    b1 = jax.random.normal(k2, (1, hidden_size), jnp.float32) * 0.02
    w2 = (jax.random.normal(k3, (hidden_size, hidden_size), jnp.float32) * 0.02).astype(dtype)
    b2 = jax.random.normal(k4, (1, hidden_size), jnp.float32) * 0.02
    return w1, b1, w2, b2


if __name__ == "__main__":
    # Small shapes consistent with the module: caption [B, token_num, in_channels].
    # NOTE: H here is 32 (toy); real deployments (H=1152) get lane-dense stores.
    B, T, Cin, H = 2, 8, 16, 32
    key = jax.random.PRNGKey(0)
    kx, kp = jax.random.split(key)
    caption = jax.random.normal(kx, (B, T, Cin), jnp.float32).astype(jnp.bfloat16)
    w1, b1, w2, b2 = init_caption_embedder_params(kp, Cin, H, dtype=jnp.bfloat16)

    out = caption_embedder_forward(caption, w1, b1, w2, b2)
    out = jax.block_until_ready(out)

    # Pure-JAX f32 reference of the same math (inputs are the same bf16 values).
    xf = caption.astype(jnp.float32).reshape(-1, Cin)
    w1f, b1f, w2f, b2f = (p.astype(jnp.float32) for p in (w1, b1, w2, b2))
    h = xf @ w1f + b1f
    h = 0.5 * h * (1.0 + jnp.tanh(0.7978845608028654 * (h + 0.044715 * h ** 3)))
    ref = (h @ w2f + b2f).reshape(B, T, H)

    assert out.shape == (B, T, H)
    assert out.dtype == caption.dtype
    # bf16 MXU path (and bf16 rounding of the GELU output) -> bf16-level tolerance vs f32 ref.
    assert jnp.allclose(out.astype(jnp.float32), ref, atol=2e-2, rtol=5e-2), \
        "mismatch vs reference"

    print("KERNEL_OK")
</pallas_src>

<mosaic_0001>
module attributes {stable_mosaic.version = 11 : i64} {
  func.func @_mlp_kernel(%arg0: i32, %arg1: i32, %arg2: memref<16x16xbf16, #tpu.memory_space<vmem>>, %arg3: memref<16x32xbf16, #tpu.memory_space<vmem>>, %arg4: memref<1x32xf32, #tpu.memory_space<vmem>>, %arg5: memref<32x32xbf16, #tpu.memory_space<vmem>>, %arg6: memref<1x32xf32, #tpu.memory_space<vmem>>, %arg7: memref<16x32xbf16, #tpu.memory_space<vmem>>, %arg8: memref<16x32xf32, #tpu.memory_space<vmem>>) attributes {dimension_semantics = [#tpu.dimension_semantics<parallel>, #tpu.dimension_semantics<arbitrary>], iteration_bounds = array<i64: 1, 1>, scalar_prefetch = 0 : i64, scratch_operands = 1 : i64, tpu.core_type = #tpu.core_type<tc>, window_params = [{transform_indices = @transform_0, window_bounds = array<i64: 16, 16>}, {transform_indices = @transform_1, window_bounds = array<i64: 16, 32>}, {pipeline_mode = #tpu.pipeline_mode<synchronous>, transform_indices = @transform_2, window_bounds = array<i64: 1, 32>}, {pipeline_mode = #tpu.pipeline_mode<synchronous>, transform_indices = @transform_3, window_bounds = array<i64: 32, 32>}, {pipeline_mode = #tpu.pipeline_mode<synchronous>, transform_indices = @transform_4, window_bounds = array<i64: 1, 32>}, {transform_indices = @transform_5, window_bounds = array<i64: 16, 32>}]} {
    %c0_i32 = arith.constant 0 : i32
    %0 = arith.cmpi eq, %arg1, %c0_i32 : i32
    %1 = arith.extui %0 : i1 to i32
    %c0_i32_0 = arith.constant 0 : i32
    %2 = arith.cmpi ne, %1, %c0_i32_0 : i32
    scf.if %2 {
      %cst_10 = arith.constant 0.000000e+00 : f32
      %12 = vector.broadcast %cst_10 : f32 to vector<16x32xf32>
      %c0_11 = arith.constant 0 : index
      %c0_12 = arith.constant 0 : index
      %13 = vector.load %arg8[%c0_11, %c0_12] : memref<16x32xf32, #tpu.memory_space<vmem>>, vector<16x32xf32>
      tpu.vector_store %arg8[%c0_11, %c0_12], %12 {strides = array<i32>} : memref<16x32xf32, #tpu.memory_space<vmem>>, vector<16x32xf32>,
    } else {
    }
    %c0 = arith.constant 0 : index
    %c0_1 = arith.constant 0 : index
    %3 = vector.load %arg8[%c0, %c0_1] : memref<16x32xf32, #tpu.memory_space<vmem>>, vector<16x32xf32>
    %c0_2 = arith.constant 0 : index
    %c0_3 = arith.constant 0 : index
    %4 = vector.load %arg2[%c0_2, %c0_3] : memref<16x16xbf16, #tpu.memory_space<vmem>>, vector<16x16xbf16>
    %c0_4 = arith.constant 0 : index
    %c0_5 = arith.constant 0 : index
    %5 = vector.load %arg3[%c0_4, %c0_5] : memref<16x32xbf16, #tpu.memory_space<vmem>>, vector<16x32xbf16>
    %cst = arith.constant dense<0.000000e+00> : vector<16x32xf32>
    %6 = tpu.matmul %4, %5, %cst {dimension_numbers = #tpu.dot_dimension_numbers<[1], [0], [0], [1], [0, 0, 1, 1], [], []>} : vector<16x16xbf16>, vector<16x32xbf16>, vector<16x32xf32> -> vector<16x32xf32>
    %7 = arith.addf %3, %6 : vector<16x32xf32>
    %c0_6 = arith.constant 0 : index
    %c0_7 = arith.constant 0 : index
    %8 = vector.load %arg8[%c0_6, %c0_7] : memref<16x32xf32, #tpu.memory_space<vmem>>, vector<16x32xf32>
    tpu.vector_store %arg8[%c0_6, %c0_7], %7 {strides = array<i32>} : memref<16x32xf32, #tpu.memory_space<vmem>>, vector<16x32xf32>,
    %c0_i32_8 = arith.constant 0 : i32
    %9 = arith.cmpi eq, %arg1, %c0_i32_8 : i32
    %10 = arith.extui %9 : i1 to i32
    %c0_i32_9 = arith.constant 0 : i32
    %11 = arith.cmpi ne, %10, %c0_i32_9 : i32
    scf.if %11 {
      %c0_10 = arith.constant 0 : index
      %c0_11 = arith.constant 0 : index
      %12 = vector.load %arg8[%c0_10, %c0_11] : memref<16x32xf32, #tpu.memory_space<vmem>>, vector<16x32xf32>
      %c0_12 = arith.constant 0 : index
      %c0_13 = arith.constant 0 : index
      %13 = vector.load %arg4[%c0_12, %c0_13] : memref<1x32xf32, #tpu.memory_space<vmem>>, vector<1x32xf32>
      %14 = vector.broadcast %13 : vector<1x32xf32> to vector<16x32xf32>
      %15 = arith.addf %12, %14 : vector<16x32xf32>
      %cst_14 = arith.constant 5.000000e-01 : f32
      %16 = vector.broadcast %cst_14 : f32 to vector<16x32xf32>
      %17 = arith.mulf %16, %15 : vector<16x32xf32>
      %18 = arith.mulf %15, %15 : vector<16x32xf32>
      %19 = arith.mulf %18, %15 : vector<16x32xf32>
      %cst_15 = arith.constant 4.471500e-02 : f32
      %20 = vector.broadcast %cst_15 : f32 to vector<16x32xf32>
      %21 = arith.mulf %20, %19 : vector<16x32xf32>
      %22 = arith.addf %15, %21 : vector<16x32xf32>
      %cst_16 = arith.constant 0.797884583 : f32
      %23 = vector.broadcast %cst_16 : f32 to vector<16x32xf32>
      %24 = arith.mulf %23, %22 : vector<16x32xf32>
      %25 = math.tanh %24 : vector<16x32xf32>
      %cst_17 = arith.constant 1.000000e+00 : f32
      %26 = vector.broadcast %cst_17 : f32 to vector<16x32xf32>
      %27 = arith.addf %26, %25 : vector<16x32xf32>
      %28 = arith.mulf %17, %27 : vector<16x32xf32>
      %29 = arith.truncf %28 : vector<16x32xf32> to vector<16x32xbf16>
      %c0_18 = arith.constant 0 : index
      %c0_19 = arith.constant 0 : index
      %30 = vector.load %arg5[%c0_18, %c0_19] : memref<32x32xbf16, #tpu.memory_space<vmem>>, vector<32x32xbf16>
      %cst_20 = arith.constant dense<0.000000e+00> : vector<16x32xf32>
      %31 = tpu.matmul %29, %30, %cst_20 {dimension_numbers = #tpu.dot_dimension_numbers<[1], [0], [0], [1], [0, 0, 1, 1], [], []>} : vector<16x32xbf16>, vector<32x32xbf16>, vector<16x32xf32> -> vector<16x32xf32>
      %c0_21 = arith.constant 0 : index
      %c0_22 = arith.constant 0 : index
      %32 = vector.load %arg6[%c0_21, %c0_22] : memref<1x32xf32, #tpu.memory_space<vmem>>, vector<1x32xf32>
      %33 = vector.broadcast %32 : vector<1x32xf32> to vector<16x32xf32>
      %34 = arith.addf %31, %33 : vector<16x32xf32>
      %35 = arith.truncf %34 : vector<16x32xf32> to vector<16x32xbf16>
      %c0_23 = arith.constant 0 : index
      %c0_24 = arith.constant 0 : index
      %36 = vector.load %arg7[%c0_23, %c0_24] : memref<16x32xbf16, #tpu.memory_space<vmem>>, vector<16x32xbf16>
      tpu.vector_store %arg7[%c0_23, %c0_24], %35 {strides = array<i32>} : memref<16x32xbf16, #tpu.memory_space<vmem>>, vector<16x32xbf16>,
    } else {
    }
    return
  }
  func.func @transform_0(%arg0: i32, %arg1: i32) -> (i32, i32) {
    %c0_i32 = arith.constant 0 : i32
    return %arg0, %arg1 : i32, i32
  }
  func.func @transform_1(%arg0: i32, %arg1: i32) -> (i32, i32) {
    %c0_i32 = arith.constant 0 : i32
    %c0_i32_0 = arith.constant 0 : i32
    return %arg1, %c0_i32 : i32, i32
  }
  func.func @transform_2(%arg0: i32, %arg1: i32) -> (i32, i32) {
    %c0_i32 = arith.constant 0 : i32
    %c0_i32_0 = arith.constant 0 : i32
    %c0_i32_1 = arith.constant 0 : i32
    return %c0_i32, %c0_i32_0 : i32, i32
  }
  func.func @transform_3(%arg0: i32, %arg1: i32) -> (i32, i32) {
    %c0_i32 = arith.constant 0 : i32
    %c0_i32_0 = arith.constant 0 : i32
    %c0_i32_1 = arith.constant 0 : i32
    return %c0_i32, %c0_i32_0 : i32, i32
  }
  func.func @transform_4(%arg0: i32, %arg1: i32) -> (i32, i32) {
    %c0_i32 = arith.constant 0 : i32
    %c0_i32_0 = arith.constant 0 : i32
    %c0_i32_1 = arith.constant 0 : i32
    return %c0_i32, %c0_i32_0 : i32, i32
  }
  func.func @transform_5(%arg0: i32, %arg1: i32) -> (i32, i32) {
    %c0_i32 = arith.constant 0 : i32
    %c0_i32_0 = arith.constant 0 : i32
    return %arg0, %c0_i32 : i32, i32
  }
}

</mosaic_0001>

<llo_original>
// kernel: caption_embedder_forward.1
$region0: #{caption_embedder_forward.1}
  #allocation0 [shape = 'u32[]', space=smem, size = 0x4, offset = 0x4, fixed_abs, tag = 'smem constant byte address 0x4 - core index']
  #allocation1 [shape = 'u32[72,128]{1,0:T(1,128)}', space=vmem, size = 0x9000, scoped, tag = 'internal scratch']
  #allocation2 [shape = 'f32[16,32]{1,0:T(8,128)}', space=vmem, size = 0x2000, scoped, tag = 'scratch operand']
  %s0 = inlined_call_operand.hbm [shape: bf16[16,16], index: 0, kind: input, shape index: {}]
  %s1 = inlined_call_operand.hbm [shape: bf16[16,32], index: 1, kind: input, shape index: {}]
  %s2 = inlined_call_operand.vmem [shape: f32[1,32], index: 2, kind: input, shape index: {}]
  %s3 = inlined_call_operand.hbm [shape: bf16[32,32], index: 3, kind: input, shape index: {}]
  %s4 = inlined_call_operand.vmem [shape: f32[1,32], index: 4, kind: input, shape index: {}]
  %s5 = inlined_call_operand.hbm [shape: bf16[16,32], index: 5, kind: output, shape index: {}]
  %s6 = sld [smem:[#allocation0]]
  $region50: #{caption_embedder_forward.1} parent=0
    _
  %s8 = ssub.s32 1, %s6
  %s9 = scalar_select 0, %s8, %s6
  $region1: #{caption_embedder_forward.1} parent=0
    #allocation3 [shape = 'u8[4096]{0}', space=vmem, size = 0x1000, scoped, tag = 'input window, operand 0, single buffered']
    #allocation4 [shape = 's32[1]{0}', space=sflag, size = 0x4, scoped, tag = 'scoped memory for caption_embedder_forward.1']
    #allocation5 [shape = 's32[1]{0}', space=sflag, size = 0x4, scoped, tag = 'scoped memory for caption_embedder_forward.1']
    #allocation6 [shape = 'u8[4096]{0}', space=vmem, size = 0x1000, scoped, tag = 'input window, operand 1, single buffered']
    #allocation7 [shape = 's32[1]{0}', space=sflag, size = 0x4, scoped, tag = 'scoped memory for caption_embedder_forward.1']
    #allocation8 [shape = 'u8[8192]{0}', space=vmem, size = 0x2000, scoped, tag = 'input window, operand 3, single buffered']
    #allocation9 [shape = 'u8[4096]{0}', space=vmem, size = 0x1000, scoped, tag = 'output window, operand 0, single buffered']
    %10 = vsyncpa [#allocation4], 0
    %11 = vsyncpa [#allocation7], 0
    %12 = vsyncpa [#allocation5], 0
    // Predicated region
    $region2: #{caption_embedder_forward.1} parent=1 // pred_check
      _
    $region3: #{caption_embedder_forward.1} parent=1 // pred_check_branch
      %14 = sbr.rel (0) target = $region5
    $region4: #{caption_embedder_forward.1} parent=1 // pred_region
      %16 = vsyncadd [#allocation4], 0
      %s17 = sshll.u32 %s0, 4
      %s18 = int_to_ptr.hbm [resolvable:$true] %s17
      %s19 = sshll.u32 [#allocation3], 4
      %s20 = int_to_ptr.vmem [resolvable:$true] %s19
      %25 = dma.hbm_to_vmem [thread:$0]  %s18, 128, %s20, [#allocation4], 64, 64, 4
    $region5: #{caption_embedder_forward.1} parent=1 // pred_fallthru
      _
    // Predicated region
    $region6: #{caption_embedder_forward.1} parent=1 // pred_check
      _
    $region7: #{caption_embedder_forward.1} parent=1 // pred_check_branch
      %27 = sbr.rel (0) target = $region9
    $region8: #{caption_embedder_forward.1} parent=1 // pred_region
      %29 = vsyncadd [#allocation7], 0
      %s30 = sshll.u32 %s1, 4
      %s31 = int_to_ptr.hbm [resolvable:$true] %s30
      %s32 = sshll.u32 [#allocation6], 4
      %s33 = int_to_ptr.vmem [resolvable:$true] %s32
      %38 = dma.hbm_to_vmem [thread:$0]  %s31, 128, %s33, [#allocation7], 64, 64, 4
    $region9: #{caption_embedder_forward.1} parent=1 // pred_fallthru
      _
    // Predicated region
    $region10: #{caption_embedder_forward.1} parent=1 // pred_check
      _
    $region11: #{caption_embedder_forward.1} parent=1 // pred_check_branch
      %40 = sbr.rel (0) target = $region13
    $region12: #{caption_embedder_forward.1} parent=1 // pred_region
      _
    $region13: #{caption_embedder_forward.1} parent=1 // pred_fallthru
      _
    // Predicated region
    $region14: #{caption_embedder_forward.1} parent=1 // pred_check
      _
    $region15: #{caption_embedder_forward.1} parent=1 // pred_check_branch
      %42 = sbr.rel (0) target = $region17
    $region16: #{caption_embedder_forward.1} parent=1 // pred_region
      %44 = vsyncadd [#allocation7], 0
      %s45 = sshll.u32 %s3, 4
      %s46 = int_to_ptr.hbm [resolvable:$true] %s45
      %s47 = sshll.u32 [#allocation8], 4
      %s48 = int_to_ptr.vmem [resolvable:$true] %s47
      %53 = dma.hbm_to_vmem [thread:$0]  %s46, 256, %s48, [#allocation7], 64, 64, 4
    $region17: #{caption_embedder_forward.1} parent=1 // pred_fallthru
      _
    // Predicated region
    $region18: #{caption_embedder_forward.1} parent=1 // pred_check
      _
    $region19: #{caption_embedder_forward.1} parent=1 // pred_check_branch
      %55 = sbr.rel (0) target = $region21
    $region20: #{caption_embedder_forward.1} parent=1 // pred_region
      _
    $region21: #{caption_embedder_forward.1} parent=1 // pred_fallthru
      _
    // Predicated region
    $region22: #{caption_embedder_forward.1} parent=1 // pred_check
      _
    $region23: #{caption_embedder_forward.1} parent=1 // pred_check_branch
      %57 = sbr.rel (0) target = $region25
    $region24: #{caption_embedder_forward.1} parent=1 // pred_region
      %59 = dma.done [#allocation4], 128
    $region25: #{caption_embedder_forward.1} parent=1 // pred_fallthru
      _
    // Predicated region
    $region26: #{caption_embedder_forward.1} parent=1 // pred_check
      _
    $region27: #{caption_embedder_forward.1} parent=1 // pred_check_branch
      %61 = sbr.rel (0) target = $region29
    $region28: #{caption_embedder_forward.1} parent=1 // pred_region
      %63 = dma.done [#allocation7], 128
    $region29: #{caption_embedder_forward.1} parent=1 // pred_fallthru
      _
    // Predicated region
    $region30: #{caption_embedder_forward.1} parent=1 // pred_check
      _
    $region31: #{caption_embedder_forward.1} parent=1 // pred_check_branch
      %65 = sbr.rel (0) target = $region33
    $region32: #{caption_embedder_forward.1} parent=1 // pred_region
      %67 = dma.done [#allocation7], 256
    $region33: #{caption_embedder_forward.1} parent=1 // pred_fallthru
      _
    %p69 = scmp.eq.s32.totalorder 0, 0
    // Predicated region
    $region34: #{caption_embedder_forward.1} parent=1 // pred_check
      %p70 = pneg %p69
    $region35: #{caption_embedder_forward.1} parent=1 // pred_check_branch
      %72 = sbr.rel (%p70) target = $region37
    $region36: #{caption_embedder_forward.1} parent=1 // pred_region
      %vm73 = vcmask 261120
      %74 = vst.msk [vmem:[#allocation2] sm:$0xff] %vm73, 0.0
      %75 = vst.msk [vmem:[#allocation2 + $0x8] sm:$0xff] %vm73, 0.0
    $region37: #{caption_embedder_forward.1} parent=1 // pred_fallthru
      _
    %v76 = vld [vmem:[#allocation2] sm:$0xff]
    %v77 = vld [vmem:[#allocation2 + $0x8] sm:$0xff]
    %v78 = vld [vmem:[#allocation3] sm:$0xf]
    %v79 = vld [vmem:[#allocation3 + $0x4] sm:$0xf]
    %v80 = vld [vmem:[#allocation6] sm:$0xf]
    %v81 = vld [vmem:[#allocation6 + $0x4] sm:$0xf]
    %v84 = vunpack.c.l.b16 %v78
    %v85 = vunpack.c.l.b16 %v79
    %v86 = vpack.c.b16 %v85, %v84
    %v89 = vunpack.c.l.b16 %v80
    %v90 = vunpack.c.l.b16 %v81
    %v91 = vpack.c.b16 %v90, %v89
    %vm93 = vcmask 130048
    %v95 = vsel %vm93, %v86, 0
    %97 = vmatpush.bf16.msra.mxu0 0
    %98 = vmatpush.bf16.msra.mxu0 0
    %99 = vmatpush.bf16.msra.mxu0 0
    %100 = vmatpush.bf16.msra.mxu0 0
    %101 = vmatpush.bf16.msra.mxu0 0
    %102 = vmatpush.bf16.msra.mxu0 0
    %103 = vmatpush.bf16.msra.mxu0 0
    %104 = vmatpush.bf16.msra.mxu0 %v91
    %105 = vmatmul.bf16.gmra.mxu0 %v95
    %v106 = vpop.f32.mrf.mxu0
    %v107 = vadd.f32 0.0, %v106
    %v108 = vpop.f32.mrf.mxu0
    %v109 = vadd.f32 0.0, %v108
    %110 = vdwg.mxu0
    %v111 = vadd.f32 %v76, %v107
    %v112 = vadd.f32 %v77, %v109
    %vm113 = vcmask 261120
    %114 = vst.msk [vmem:[#allocation2] sm:$0xff] %vm113, %v111
    %115 = vst.msk [vmem:[#allocation2 + $0x8] sm:$0xff] %vm113, %v112
    // Predicated region
    $region38: #{caption_embedder_forward.1} parent=1 // pred_check
      %p116 = pneg %p69
    $region39: #{caption_embedder_forward.1} parent=1 // pred_check_branch
      %118 = sbr.rel (%p116) target = $region41
    $region40: #{caption_embedder_forward.1} parent=1 // pred_region
      %v119 = vld [vmem:[#allocation2] sm:$0xff]
      %v120 = vld [vmem:[#allocation2 + $0x8] sm:$0xff]
      %v121 = vld [vmem:[%s2] sm:$0x1]
      %v123 = vperm.slane %v121, 0
      %v125 = vadd.f32 %v119, %v123
      %v126 = vadd.f32 %v120, %v123
      %v127 = vmul.f32 %v125, 0.5
      %v128 = vmul.f32 %v126, 0.5
      %v129 = vmul.f32 %v125, %v125
      %v130 = vmul.f32 %v126, %v126
      %v131 = vmul.f32 %v129, %v125
      %v132 = vmul.f32 %v130, %v126
      %v133 = vmul.f32 %v131, 0.044715
      %v134 = vmul.f32 %v132, 0.044715
      %v135 = vadd.f32 %v125, %v133
      %v136 = vadd.f32 %v126, %v134
      %v137 = vmul.f32 %v135, 0.7978846
      %v138 = vmul.f32 %v136, 0.7978846
      %v139 = vtanh.pop %v137
      %v140 = vtanh.pop %v138
      %v141 = vadd.f32 %v139, 1.0
      %v142 = vadd.f32 %v140, 1.0
      %v143 = vmul.f32 %v127, %v141
      %v144 = vmul.f32 %v128, %v142
      %v145 = vpack.c.bf16 %v144, %v143
      %v146 = vld [vmem:[#allocation8] sm:$0xf]
      %v147 = vld [vmem:[#allocation8 + $0x4] sm:$0xf]
      %v148 = vld [vmem:[#allocation8 + $0x8] sm:$0xf]
      %v149 = vld [vmem:[#allocation8 + $0xc] sm:$0xf]
      %v150 = vld [vmem:[%s4] sm:$0x1]
      %v152 = vperm.slane %v150, 0
      %v158 = vunpack.c.l.b16 %v146
      %v159 = vunpack.c.l.b16 %v147
      %v160 = vunpack.c.l.b16 %v148
      %v161 = vunpack.c.l.b16 %v149
      %v162 = vpack.c.b16 %v159, %v158
      %v163 = vpack.c.b16 %v161, %v160
      %v167 = vsel %vm113, %v145, 0
      %169 = vmatpush.bf16.msra.mxu0 0
      %170 = vmatpush.bf16.msra.mxu0 0
      %171 = vmatpush.bf16.msra.mxu0 0
      %172 = vmatpush.bf16.msra.mxu0 0
      %173 = vmatpush.bf16.msra.mxu0 0
      %174 = vmatpush.bf16.msra.mxu0 0
      %175 = vmatpush.bf16.msra.mxu0 %v163
      %176 = vmatpush.bf16.msra.mxu0 %v162
      %177 = vmatmul.bf16.gmra.mxu0 %v167
      %v178 = vpop.f32.mrf.mxu0
      %v179 = vadd.f32 %v152, %v178
      %v180 = vpop.f32.mrf.mxu0
      %v181 = vadd.f32 %v152, %v180
      %182 = vdwg.mxu0
      %v183 = vpack.c.bf16 %v179, %v179
      %v184 = vpack.c.bf16 %v181, %v181
      %vm185 = vcmask 257024
      %186 = vst.msk [vmem:[#allocation9] sm:$0xf] %vm185, %v183
      %187 = vst.msk [vmem:[#allocation9 + $0x4] sm:$0xf] %vm185, %v184
    $region41: #{caption_embedder_forward.1} parent=1 // pred_fallthru
      _
    // Predicated region
    $region42: #{caption_embedder_forward.1} parent=1 // pred_check
      _
    $region43: #{caption_embedder_forward.1} parent=1 // pred_check_branch
      %189 = sbr.rel (0) target = $region45
    $region44: #{caption_embedder_forward.1} parent=1 // pred_region
      %191 = vsyncadd [#allocation5], 0
      %s192 = sshll.u32 [#allocation9], 4
      %s193 = int_to_ptr.vmem [resolvable:$true] %s192
      %s194 = sshll.u32 %s5, 4
      %s195 = int_to_ptr.hbm [resolvable:$true] %s194
      %200 = dma.vmem_to_hbm [thread:$0]  %s193, 128, %s195, [#allocation5], 64, 64, 4
    $region45: #{caption_embedder_forward.1} parent=1 // pred_fallthru
      _
    // Predicated region
    $region46: #{caption_embedder_forward.1} parent=1 // pred_check
      _
    $region47: #{caption_embedder_forward.1} parent=1 // pred_check_branch
      %202 = sbr.rel (0) target = $region49
    $region48: #{caption_embedder_forward.1} parent=1 // pred_region
      %204 = dma.done [#allocation5], 128
    $region49: #{caption_embedder_forward.1} parent=1 // pred_fallthru
      _
    %205 = vsyncpa [#allocation4], 1
    %206 = vsyncpa [#allocation7], 1
    %207 = vsyncpa [#allocation5], 1

</llo_original>
